<compile_context>
chip_gen: v5e
topology: v5e:2x2
jax: 0.10.0
libtpu: 0.0.40
codegen_flags: <defaults>
</compile_context>

<pallas_src>
import jax
import jax.numpy as jnp
from jax.experimental import pallas as pl
from jax.experimental.pallas import tpu as pltpu


_MIN_BLOCK_BYTES = 64 * 1024       # floor when shrinking blocks for pipeline depth
_TARGET_MIN_BLOCKS = 4             # aim for >= 4 grid steps (>= 2 per TC on v7x)


def _warp_kernel(params_ref, y_ref, z_ref):
    # params_ref: SMEM (4,) float32 -> a, b, c, d
    a = params_ref[0]
    b = params_ref[1]
    c = params_ref[2]
    d = params_ref[3]
    y = y_ref[...].astype(jnp.float32)
    z_ref[...] = (a * jnp.tanh(b * y + c) + d).astype(z_ref.dtype)


def _chip_kind():
    try:
        return jax.devices()[0].device_kind.lower()
    except Exception:
        return ""


def _default_block_bytes(kind):
    # v7x: ~3.2 TB/s per TC -> bigger blocks amortize per-step overhead.
    if "v7" in kind or "7x" in kind:
        return 8 * 1024 * 1024
    if "v6" in kind:
        return 4 * 1024 * 1024
    return 2 * 1024 * 1024          # v5e already ~roofline at 2 MiB


def _dim_semantics(kind, num_blocks):
    # Only core_parallel actually changes codegen; use it on v7x (2 TCs) when
    # there is more than one block to split.  Single-TC chips keep "parallel".
    if ("v7" in kind or "7x" in kind) and num_blocks >= 2:
        return (pltpu.CORE_PARALLEL,)
    return ("parallel",)


def _pick_lane_width(total, max_lane):
    """Largest lane width (multiple of 128, <= max_lane) dividing `total`,
    preferring one that yields >= 8 rows.  Returns None if 128 doesn't divide."""
    candidates = [lw for lw in (4096, 2048, 1024, 512, 256, 128) if lw <= max_lane]
    divisors = [lw for lw in candidates if total % lw == 0]
    if not divisors:
        return None
    for lw in divisors:              # descending
        if total // lw >= 8:
            return lw
    return divisors[-1]              # tiny input: take the smallest (most rows)


def warp_forward(y, a, b, c, d, *, lane_width=1024, target_block_bytes=None):
    """z = a * tanh(b * y + c) + d, elementwise, via a Pallas TPU kernel.

    Accepts any shape, f32 or bf16.  The array is viewed as a lane-dense
    (rows, lane) slab and streamed block-by-block; the last partial block is
    handled by Pallas boundary masking (no pad-to-block, no extra HBM passes).
    """
    orig_shape = y.shape
    dtype = y.dtype
    itemsize = jnp.dtype(dtype).itemsize
    total = int(y.size)
    if total == 0:
        return y

    assert lane_width % 128 == 0, "lane_width must be a multiple of 128"

    kind = _chip_kind()
    if target_block_bytes is None:
        target_block_bytes = _default_block_bytes(kind)

    # Packed-sublane granularity: 8 rows (f32), 16 (bf16), 32 (int8/fp8).
    gran = max(8, 32 // itemsize)

    lw = _pick_lane_width(total, lane_width)
    padded_total = total
    if lw is None:
        # Ragged total (not a multiple of 128): pad the flat view by <128
        # elements and slice after the kernel.  This is the only path with an
        # extra pad/slice pass; all 128-divisible sizes avoid it entirely.
        lw = 128
        padded_total = -(-total // lw) * lw
    rows = padded_total // lw

    # Rows per block from the byte budget, rounded to sublane granularity.
    tile_rows = max(gran, (target_block_bytes // (lw * itemsize)) // gran * gran)
    # Guarantee pipeline depth: if <4 steps, shrink (floor: 64 KiB blocks).
    floor_rows = max(gran, (_MIN_BLOCK_BYTES // (lw * itemsize)) // gran * gran)
    if -(-rows // tile_rows) < _TARGET_MIN_BLOCKS:
        shrunk = max(gran, (-(-rows // _TARGET_MIN_BLOCKS)) // gran * gran)
        tile_rows = min(tile_rows, max(floor_rows, shrunk))
    # Never use a block taller than the (granularity-rounded) row count.
    tile_rows = min(tile_rows, max(gran, -(-rows // gran) * gran))

    num_blocks = -(-rows // tile_rows)            # cdiv; last block masked by Pallas

    flat = y.reshape(-1)
    if padded_total != total:
        flat = jnp.pad(flat, (0, padded_total - total))
    y2 = flat.reshape(rows, lw)

    params = jnp.asarray([a, b, c, d], dtype=jnp.float32)

    # 2x double-buffered input + 2x output buffers + headroom; 48 MiB cap is
    # safe on every generation (v7x has 64 MiB per TC).
    block_bytes = tile_rows * lw * itemsize
    vmem_limit = int(min(48 * 1024 * 1024, max(32 * 1024 * 1024, 5 * block_bytes)))

    z2 = pl.pallas_call(
        _warp_kernel,
        out_shape=jax.ShapeDtypeStruct((rows, lw), dtype),
        grid_spec=pl.GridSpec(
            grid=(num_blocks,),
            in_specs=[
                pl.BlockSpec(memory_space=pltpu.MemorySpace.SMEM),   # params (4,)
                pl.BlockSpec((tile_rows, lw), lambda i: (i, 0)),     # y block
            ],
            out_specs=pl.BlockSpec((tile_rows, lw), lambda i: (i, 0)),
        ),
        compiler_params=pltpu.CompilerParams(
            dimension_semantics=_dim_semantics(kind, num_blocks),
            vmem_limit_bytes=vmem_limit,
        ),
    )(params, y2)

    if padded_total != total:
        return z2.reshape(-1)[:total].reshape(orig_shape)
    return z2.reshape(orig_shape)


if __name__ == "__main__":
    # Deterministic parameters matching WarpClass.__init__
    a, b, c, d = 12.4, 10.5, 10.5, 0.5
    key = jax.random.PRNGKey(0)
    k1, k2, k3, k4 = jax.random.split(key, 4)

    def ref(y):
        yf = y.astype(jnp.float32)
        return (a * jnp.tanh(b * yf + c) + d).astype(y.dtype)

    # Test 1: small, 128-divisible input -> fast path, no pad, no slice.
    y1 = jax.random.normal(k1, (16, 128), dtype=jnp.float32)
    z1 = jax.block_until_ready(warp_forward(y1, a, b, c, d))
    assert z1.shape == y1.shape
    assert jnp.allclose(z1, ref(y1), atol=1e-5, rtol=1e-5), "mismatch (test 1)"

    # Test 2: ragged total (not a multiple of 128) -> minimal-pad fallback path.
    y2 = jax.random.normal(k2, (52, 37), dtype=jnp.float32)
    z2 = jax.block_until_ready(warp_forward(y2, a, b, c, d))
    assert z2.shape == y2.shape
    assert jnp.allclose(z2, ref(y2), atol=1e-5, rtol=1e-5), "mismatch (test 2)"

    # Test 3: multi-block grid with a masked (partial) last block, f32.
    y3 = jax.random.normal(k3, (520, 256), dtype=jnp.float32)
    z3 = jax.block_until_ready(
        warp_forward(y3, a, b, c, d, lane_width=256, target_block_bytes=64 * 1024)
    )
    assert z3.shape == y3.shape
    assert jnp.allclose(z3, ref(y3), atol=1e-5, rtol=1e-5), "mismatch (test 3)"

    # Test 4: bf16 I/O (f32 compute in-kernel, downcast on store).
    y4 = jax.random.normal(k4, (64, 256), dtype=jnp.float32).astype(jnp.bfloat16)
    z4 = jax.block_until_ready(warp_forward(y4, a, b, c, d))
    assert z4.shape == y4.shape and z4.dtype == jnp.bfloat16
    assert jnp.allclose(z4.astype(jnp.float32), ref(y4).astype(jnp.float32),
                        atol=2e-2, rtol=2e-2), "mismatch (test 4)"

    print("KERNEL_OK")
</pallas_src>

<mosaic_0001>
module attributes {stable_mosaic.version = 11 : i64} {
  func.func @_warp_kernel(%arg0: i32, %arg1: memref<4xf32, #tpu.memory_space<smem>>, %arg2: memref<8x256xf32, #tpu.memory_space<vmem>>, %arg3: memref<8x256xf32, #tpu.memory_space<vmem>>) attributes {dimension_semantics = [#tpu.dimension_semantics<parallel>], iteration_bounds = array<i64: 1>, scalar_prefetch = 0 : i64, scratch_operands = 0 : i64, tpu.core_type = #tpu.core_type<tc>, window_params = [{transform_indices = @transform_0, window_bounds = array<i64: 4>}, {transform_indices = @transform_1, window_bounds = array<i64: 8, 256>}, {transform_indices = @transform_2, window_bounds = array<i64: 8, 256>}]} {
    %c0 = arith.constant 0 : index
    %0 = memref.load %arg1[%c0] : memref<4xf32, #tpu.memory_space<smem>>
    %c1 = arith.constant 1 : index
    %1 = memref.load %arg1[%c1] : memref<4xf32, #tpu.memory_space<smem>>
    %c2 = arith.constant 2 : index
    %2 = memref.load %arg1[%c2] : memref<4xf32, #tpu.memory_space<smem>>
    %c3 = arith.constant 3 : index
    %3 = memref.load %arg1[%c3] : memref<4xf32, #tpu.memory_space<smem>>
    %c0_0 = arith.constant 0 : index
    %c0_1 = arith.constant 0 : index
    %4 = vector.load %arg2[%c0_0, %c0_1] : memref<8x256xf32, #tpu.memory_space<vmem>>, vector<8x256xf32>
    %5 = vector.broadcast %1 : f32 to vector<8x256xf32>
    %6 = arith.mulf %5, %4 : vector<8x256xf32>
    %7 = vector.broadcast %2 : f32 to vector<8x256xf32>
    %8 = arith.addf %6, %7 : vector<8x256xf32>
    %9 = math.tanh %8 : vector<8x256xf32>
    %10 = vector.broadcast %0 : f32 to vector<8x256xf32>
    %11 = arith.mulf %10, %9 : vector<8x256xf32>
    %12 = vector.broadcast %3 : f32 to vector<8x256xf32>
    %13 = arith.addf %11, %12 : vector<8x256xf32>
    %c0_2 = arith.constant 0 : index
    %c0_3 = arith.constant 0 : index
    %14 = vector.load %arg3[%c0_2, %c0_3] : memref<8x256xf32, #tpu.memory_space<vmem>>, vector<8x256xf32>
    tpu.vector_store %arg3[%c0_2, %c0_3], %13 {strides = array<i32>} : memref<8x256xf32, #tpu.memory_space<vmem>>, vector<8x256xf32>,
    return
  }
  func.func @transform_0(%arg0: i32) -> i32 {
    %c0_i32 = arith.constant 0 : i32
    %c0_i32_0 = arith.constant 0 : i32
    return %c0_i32 : i32
  }
  func.func @transform_1(%arg0: i32) -> (i32, i32) {
    %c0_i32 = arith.constant 0 : i32
    %c0_i32_0 = arith.constant 0 : i32
    return %arg0, %c0_i32 : i32, i32
  }
  func.func @transform_2(%arg0: i32) -> (i32, i32) {
    %c0_i32 = arith.constant 0 : i32
    %c0_i32_0 = arith.constant 0 : i32
    return %arg0, %c0_i32 : i32, i32
  }
}

</mosaic_0001>

<llo_original>
// kernel: tpu_custom_call.1
$region0: #{tpu_custom_call.1}
  #allocation0 [shape = 'u32[]', space=smem, size = 0x4, offset = 0x4, fixed_abs, tag = 'smem constant byte address 0x4 - core index']
  #allocation1 [shape = 'u32[72,128]{1,0:T(1,128)}', space=vmem, size = 0x9000, scoped, tag = 'internal scratch']
  %s0 = inlined_call_operand.hbm [shape: f32[4], index: 0, kind: input, shape index: {}]
  %s1 = inlined_call_operand.hbm [shape: f32[8,256], index: 1, kind: input, shape index: {}]
  %s2 = inlined_call_operand.hbm [shape: f32[8,256], index: 2, kind: output, shape index: {}]
  %s3 = sld [smem:[#allocation0]]
  $region26: #{tpu_custom_call.1} parent=0
    _
  %s5 = ssub.s32 1, %s3
  %s6 = scalar_select 0, %s5, %s3
  $region1: #{tpu_custom_call.1} parent=0
    #allocation2 [shape = 'u8[512]{0}', space=smem, size = 0x200, scoped, tag = 'input window, operand 0, single buffered']
    #allocation3 [shape = 's32[1]{0}', space=sflag, size = 0x4, scoped, tag = 'scoped memory for tpu_custom_call.1']
    #allocation4 [shape = 's32[1]{0}', space=sflag, size = 0x4, scoped, tag = 'scoped memory for tpu_custom_call.1']
    #allocation5 [shape = 's32[1]{0}', space=sflag, size = 0x4, scoped, tag = 'scoped memory for tpu_custom_call.1']
    #allocation6 [shape = 'u8[8192]{0}', space=vmem, size = 0x2000, scoped, tag = 'input window, operand 1, single buffered']
    #allocation7 [shape = 'u8[8192]{0}', space=vmem, size = 0x2000, scoped, tag = 'output window, operand 0, single buffered']
    %7 = vsyncpa [#allocation5], 0
    %8 = vsyncpa [#allocation3], 0
    %9 = vsyncpa [#allocation4], 0
    // Predicated region
    $region2: #{tpu_custom_call.1} parent=1 // pred_check
      _
    $region3: #{tpu_custom_call.1} parent=1 // pred_check_branch
      %11 = sbr.rel (0) target = $region5
    $region4: #{tpu_custom_call.1} parent=1 // pred_region
      %13 = vsyncadd [#allocation5], 0
      %s15 = sshll.u32 %s0, 4
      %s16 = int_to_ptr.hbm [resolvable:$true] %s15
      %18 = dma.hbm_to_smem %s16, 16, [#allocation2], [#allocation5]
    $region5: #{tpu_custom_call.1} parent=1 // pred_fallthru
      _
    // Predicated region
    $region6: #{tpu_custom_call.1} parent=1 // pred_check
      _
    $region7: #{tpu_custom_call.1} parent=1 // pred_check_branch
      %20 = sbr.rel (0) target = $region9
    $region8: #{tpu_custom_call.1} parent=1 // pred_region
      %22 = vsyncadd [#allocation3], 0
      %s24 = sshll.u32 %s1, 4
      %s25 = int_to_ptr.hbm [resolvable:$true] %s24
      %s26 = sshll.u32 [#allocation6], 4
      %s27 = int_to_ptr.vmem [resolvable:$true] %s26
      %29 = dma.hbm_to_vmem [thread:$0]  %s25, 256, %s27, [#allocation3]
    $region9: #{tpu_custom_call.1} parent=1 // pred_fallthru
      _
    // Predicated region
    $region10: #{tpu_custom_call.1} parent=1 // pred_check
      _
    $region11: #{tpu_custom_call.1} parent=1 // pred_check_branch
      %31 = sbr.rel (0) target = $region13
    $region12: #{tpu_custom_call.1} parent=1 // pred_region
      %33 = dma.done [#allocation5], 16
    $region13: #{tpu_custom_call.1} parent=1 // pred_fallthru
      _
    // Predicated region
    $region14: #{tpu_custom_call.1} parent=1 // pred_check
      _
    $region15: #{tpu_custom_call.1} parent=1 // pred_check_branch
      %35 = sbr.rel (0) target = $region17
    $region16: #{tpu_custom_call.1} parent=1 // pred_region
      %37 = dma.done [#allocation3], 256
    $region17: #{tpu_custom_call.1} parent=1 // pred_fallthru
      _
    %38 = sfence
    %s39 = sld [smem:[#allocation2]]
    %s40 = sld [smem:[#allocation2 + $0x1]]
    %s41 = sld [smem:[#allocation2 + $0x2]]
    %s42 = sld [smem:[#allocation2 + $0x3]]
    %v43 = vld [vmem:[#allocation6] sm:$0xff]
    %v44 = vld [vmem:[#allocation6 + $0x8] sm:$0xff]
    %v45 = vstv %s40
    %v46 = vmul.f32 %v45, %v43
    %v47 = vmul.f32 %v45, %v44
    %v48 = vstv %s41
    %v49 = vadd.f32 %v46, %v48
    %v50 = vadd.f32 %v47, %v48
    %v51 = vtanh.pop %v49
    %v52 = vtanh.pop %v50
    %v53 = vstv %s39
    %v54 = vmul.f32 %v53, %v51
    %v55 = vmul.f32 %v53, %v52
    %v56 = vstv %s42
    %v57 = vadd.f32 %v54, %v56
    %v58 = vadd.f32 %v55, %v56
    %59 = vst [vmem:[#allocation7] sm:$0xff] %v57
    %60 = vst [vmem:[#allocation7 + $0x8] sm:$0xff] %v58
    // Predicated region
    $region18: #{tpu_custom_call.1} parent=1 // pred_check
      _
    $region19: #{tpu_custom_call.1} parent=1 // pred_check_branch
      %62 = sbr.rel (0) target = $region21
    $region20: #{tpu_custom_call.1} parent=1 // pred_region
      %64 = vsyncadd [#allocation4], 0
      %s66 = sshll.u32 [#allocation7], 4
      %s67 = int_to_ptr.vmem [resolvable:$true] %s66
      %s68 = sshll.u32 %s2, 4
      %s69 = int_to_ptr.hbm [resolvable:$true] %s68
      %71 = dma.vmem_to_hbm [thread:$0]  %s67, 256, %s69, [#allocation4]
    $region21: #{tpu_custom_call.1} parent=1 // pred_fallthru
      _
    // Predicated region
    $region22: #{tpu_custom_call.1} parent=1 // pred_check
      _
    $region23: #{tpu_custom_call.1} parent=1 // pred_check_branch
      %73 = sbr.rel (0) target = $region25
    $region24: #{tpu_custom_call.1} parent=1 // pred_region
      %75 = dma.done [#allocation4], 256
    $region25: #{tpu_custom_call.1} parent=1 // pred_fallthru
      _
    %76 = vsyncpa [#allocation3], 1
    %77 = vsyncpa [#allocation4], 1
    %78 = vsyncpa [#allocation5], 1

</llo_original>
